<compile_context>
chip_gen: v7x
topology: tpu7x:2x2x1
jax: 0.10.0
libtpu: 0.0.40
codegen_flags: <defaults>
</compile_context>

<pallas_src>
import functools

import jax
import jax.numpy as jnp
from jax.experimental import pallas as pl
from jax.experimental.pallas import tpu as pltpu

LANE = 128   # vreg / MXU lane width
SUBLANE = 8  # f32 sublane granularity


def _round_up(x, m):
    return (x + m - 1) // m * m


def _leaky_relu(x, negative_slope=0.01):
    return jnp.where(x > 0, x, negative_slope * x)


def base_policy_kernel(x_ref, w1_ref, b1_ref, w2_ref, b2_ref, w3_ref, b3_ref,
                       out_ref):
    # x tile: (TILE_B, D_in_pad) bf16; weights bf16; biases f32.
    # MXU matmuls in bf16 with f32 accumulation; elementwise kept in f32.
    x = x_ref[...]
    h1 = jnp.dot(x, w1_ref[...], preferred_element_type=jnp.float32) + b1_ref[...]
    h1 = _leaky_relu(h1)
    h2 = jnp.dot(h1.astype(jnp.bfloat16), w2_ref[...],
                 preferred_element_type=jnp.float32) + b2_ref[...]
    h2 = _leaky_relu(h2)
    out = jnp.dot(h2.astype(jnp.bfloat16), w3_ref[...],
                  preferred_element_type=jnp.float32) + b3_ref[...]
    out_ref[...] = out.astype(out_ref.dtype)


def prepare_params(params):
    """Pad all feature dims to 128 lanes and cast weights to bf16 ONCE.

    params: w1 (d_in, h), b1 (1, h), w2 (h, h), b2 (1, h), w3 (h, o), b3 (1, o)
    (weights stored as (in, out), i.e. transpose of PyTorch nn.Linear.weight).
    """
    d_in, h = params["w1"].shape
    o = params["w3"].shape[1]
    d_in_p, h_p, o_p = _round_up(d_in, LANE), _round_up(h, LANE), _round_up(o, LANE)

    def pad_w(w, r, c):
        return jnp.pad(w, ((0, r - w.shape[0]), (0, c - w.shape[1]))
                       ).astype(jnp.bfloat16)

    def pad_b(b, c):
        return jnp.pad(b, ((0, 0), (0, c - b.shape[1]))).astype(jnp.float32)

    prepared = {
        "w1": pad_w(params["w1"], d_in_p, h_p), "b1": pad_b(params["b1"], h_p),
        "w2": pad_w(params["w2"], h_p, h_p),    "b2": pad_b(params["b2"], h_p),
        "w3": pad_w(params["w3"], h_p, o_p),    "b3": pad_b(params["b3"], o_p),
    }
    dims = {"d_in": d_in, "d_in_p": d_in_p, "h_p": h_p, "out": o, "out_p": o_p}
    return prepared, dims


@functools.partial(jax.jit, static_argnames=("d_in", "d_in_p", "h_p", "out_dim",
                                             "out_p", "tile_b"))
def _forward_impl(x, w1, b1, w2, b2, w3, b3, *, d_in, d_in_p, h_p, out_dim,
                  out_p, tile_b):
    B = x.shape[0]
    # Large batch tiles amortize per-step overhead (~0.35 us/step); clamp for
    # tiny batches (tile stays a multiple of the 8-row f32 sublane).
    tb = min(tile_b, _round_up(B, SUBLANE))
    B_p = _round_up(B, tb)

    # Pad + cast x once (bf16 halves HBM traffic for the streamed operand).
    x_p = jnp.pad(x.astype(jnp.bfloat16),
                  ((0, B_p - B), (0, d_in_p - d_in)))

    grid = (B_p // tb,)
    out_padded = pl.pallas_call(
        base_policy_kernel,
        out_shape=jax.ShapeDtypeStruct((B_p, out_p), jnp.float32),
        grid_spec=pltpu.PrefetchScalarGridSpec(
            num_scalar_prefetch=0,
            grid=grid,
            in_specs=[
                # x streams along the batch grid axis.
                pl.BlockSpec((tb, d_in_p), lambda i: (i, 0)),
                # Weights / biases: constant index_map -> resident in VMEM.
                pl.BlockSpec((d_in_p, h_p), lambda i: (0, 0)),
                pl.BlockSpec((1, h_p), lambda i: (0, 0)),
                pl.BlockSpec((h_p, h_p), lambda i: (0, 0)),
                pl.BlockSpec((1, h_p), lambda i: (0, 0)),
                pl.BlockSpec((h_p, out_p), lambda i: (0, 0)),
                pl.BlockSpec((1, out_p), lambda i: (0, 0)),
            ],
            out_specs=pl.BlockSpec((tb, out_p), lambda i: (i, 0)),
        ),
        compiler_params=pltpu.CompilerParams(
            dimension_semantics=("parallel",)),
    )(x_p, w1, b1, w2, b2, w3, b3)

    return out_padded[:B, :out_dim]


def base_policy_forward(x, prepared, dims, *, tile_b=512):
    """x: (batch, input_dim) float32. prepared/dims from prepare_params."""
    return _forward_impl(
        x, prepared["w1"], prepared["b1"], prepared["w2"], prepared["b2"],
        prepared["w3"], prepared["b3"],
        d_in=dims["d_in"], d_in_p=dims["d_in_p"], h_p=dims["h_p"],
        out_dim=dims["out"], out_p=dims["out_p"], tile_b=tile_b)


def init_params(key, input_dim, out_dim, hidden_dim=32):
    """Deterministic init mimicking nn.Linear's uniform(-1/sqrt(fan_in), +)."""
    ks = jax.random.split(key, 6)

    def lin(kw, kb, fan_in, fan_out):
        bound = 1.0 / jnp.sqrt(fan_in)
        # stored as (in, out) == W.T relative to PyTorch
        w = jax.random.uniform(kw, (fan_in, fan_out), jnp.float32, -bound, bound)
        b = jax.random.uniform(kb, (1, fan_out), jnp.float32, -bound, bound)
        return w, b

    w1, b1 = lin(ks[0], ks[1], input_dim, hidden_dim)
    w2, b2 = lin(ks[2], ks[3], hidden_dim, hidden_dim)
    w3, b3 = lin(ks[4], ks[5], hidden_dim, out_dim)
    return {"w1": w1, "b1": b1, "w2": w2, "b2": b2, "w3": w3, "b3": b3}


def reference_forward(x, p):
    h1 = _leaky_relu(x @ p["w1"] + p["b1"])
    h2 = _leaky_relu(h1 @ p["w2"] + p["b2"])
    return h2 @ p["w3"] + p["b3"]


if __name__ == "__main__":
    batch, input_dim, hidden_dim, out_dim = 8, 16, 32, 8

    key = jax.random.PRNGKey(0)
    k_x, k_p = jax.random.split(key)
    x = jax.random.normal(k_x, (batch, input_dim), jnp.float32)
    params = init_params(k_p, input_dim, out_dim, hidden_dim)

    prepared, dims = prepare_params(params)   # pad + bf16-cast weights once
    out = base_policy_forward(x, prepared, dims)
    out = jax.block_until_ready(out)

    ref = reference_forward(x, params)
    assert out.shape == (batch, out_dim)
    # bf16 matmul operands -> loosened tolerance vs the f32 reference.
    assert jnp.allclose(out, ref, atol=3e-2, rtol=3e-2), "mismatch vs reference"

    print("KERNEL_OK")
</pallas_src>

<mosaic_0001>
module attributes {stable_mosaic.version = 11 : i64} {
  func.func @base_policy_kernel(%arg0: i32, %arg1: memref<8x128xbf16, #tpu.memory_space<vmem>>, %arg2: memref<128x128xbf16, #tpu.memory_space<vmem>>, %arg3: memref<1x128xf32, #tpu.memory_space<vmem>>, %arg4: memref<128x128xbf16, #tpu.memory_space<vmem>>, %arg5: memref<1x128xf32, #tpu.memory_space<vmem>>, %arg6: memref<128x128xbf16, #tpu.memory_space<vmem>>, %arg7: memref<1x128xf32, #tpu.memory_space<vmem>>, %arg8: memref<8x128xf32, #tpu.memory_space<vmem>>) attributes {dimension_semantics = [#tpu.dimension_semantics<parallel>], iteration_bounds = array<i64: 1>, scalar_prefetch = 0 : i64, scratch_operands = 0 : i64, tpu.core_type = #tpu.core_type<tc>, window_params = [{transform_indices = @transform_0, window_bounds = array<i64: 8, 128>}, {pipeline_mode = #tpu.pipeline_mode<synchronous>, transform_indices = @transform_1, window_bounds = array<i64: 128, 128>}, {pipeline_mode = #tpu.pipeline_mode<synchronous>, transform_indices = @transform_2, window_bounds = array<i64: 1, 128>}, {pipeline_mode = #tpu.pipeline_mode<synchronous>, transform_indices = @transform_3, window_bounds = array<i64: 128, 128>}, {pipeline_mode = #tpu.pipeline_mode<synchronous>, transform_indices = @transform_4, window_bounds = array<i64: 1, 128>}, {pipeline_mode = #tpu.pipeline_mode<synchronous>, transform_indices = @transform_5, window_bounds = array<i64: 128, 128>}, {pipeline_mode = #tpu.pipeline_mode<synchronous>, transform_indices = @transform_6, window_bounds = array<i64: 1, 128>}, {transform_indices = @transform_7, window_bounds = array<i64: 8, 128>}]} {
    %c0 = arith.constant 0 : index
    %c0_0 = arith.constant 0 : index
    %0 = vector.load %arg1[%c0, %c0_0] : memref<8x128xbf16, #tpu.memory_space<vmem>>, vector<8x128xbf16>
    %c0_1 = arith.constant 0 : index
    %c0_2 = arith.constant 0 : index
    %1 = vector.load %arg2[%c0_1, %c0_2] : memref<128x128xbf16, #tpu.memory_space<vmem>>, vector<128x128xbf16>
    %cst = arith.constant dense<0.000000e+00> : vector<8x128xf32>
    %2 = tpu.matmul %0, %1, %cst {dimension_numbers = #tpu.dot_dimension_numbers<[1], [0], [0], [1], [0, 0, 1, 1], [], []>} : vector<8x128xbf16>, vector<128x128xbf16>, vector<8x128xf32> -> vector<8x128xf32>
    %c0_3 = arith.constant 0 : index
    %c0_4 = arith.constant 0 : index
    %3 = vector.load %arg3[%c0_3, %c0_4] : memref<1x128xf32, #tpu.memory_space<vmem>>, vector<1x128xf32>
    %4 = vector.broadcast %3 : vector<1x128xf32> to vector<8x128xf32>
    %5 = arith.addf %2, %4 : vector<8x128xf32>
    %cst_5 = arith.constant 0.000000e+00 : f32
    %6 = vector.broadcast %cst_5 : f32 to vector<8x128xf32>
    %7 = arith.cmpf ogt, %5, %6 : vector<8x128xf32>
    %cst_6 = arith.constant 0.00999999977 : f32
    %8 = vector.broadcast %cst_6 : f32 to vector<8x128xf32>
    %9 = arith.mulf %8, %5 : vector<8x128xf32>
    %10 = arith.select %7, %5, %9 : vector<8x128xi1>, vector<8x128xf32>
    %11 = arith.truncf %10 : vector<8x128xf32> to vector<8x128xbf16>
    %c0_7 = arith.constant 0 : index
    %c0_8 = arith.constant 0 : index
    %12 = vector.load %arg4[%c0_7, %c0_8] : memref<128x128xbf16, #tpu.memory_space<vmem>>, vector<128x128xbf16>
    %cst_9 = arith.constant dense<0.000000e+00> : vector<8x128xf32>
    %13 = tpu.matmul %11, %12, %cst_9 {dimension_numbers = #tpu.dot_dimension_numbers<[1], [0], [0], [1], [0, 0, 1, 1], [], []>} : vector<8x128xbf16>, vector<128x128xbf16>, vector<8x128xf32> -> vector<8x128xf32>
    %c0_10 = arith.constant 0 : index
    %c0_11 = arith.constant 0 : index
    %14 = vector.load %arg5[%c0_10, %c0_11] : memref<1x128xf32, #tpu.memory_space<vmem>>, vector<1x128xf32>
    %15 = vector.broadcast %14 : vector<1x128xf32> to vector<8x128xf32>
    %16 = arith.addf %13, %15 : vector<8x128xf32>
    %cst_12 = arith.constant 0.000000e+00 : f32
    %17 = vector.broadcast %cst_12 : f32 to vector<8x128xf32>
    %18 = arith.cmpf ogt, %16, %17 : vector<8x128xf32>
    %cst_13 = arith.constant 0.00999999977 : f32
    %19 = vector.broadcast %cst_13 : f32 to vector<8x128xf32>
    %20 = arith.mulf %19, %16 : vector<8x128xf32>
    %21 = arith.select %18, %16, %20 : vector<8x128xi1>, vector<8x128xf32>
    %22 = arith.truncf %21 : vector<8x128xf32> to vector<8x128xbf16>
    %c0_14 = arith.constant 0 : index
    %c0_15 = arith.constant 0 : index
    %23 = vector.load %arg6[%c0_14, %c0_15] : memref<128x128xbf16, #tpu.memory_space<vmem>>, vector<128x128xbf16>
    %cst_16 = arith.constant dense<0.000000e+00> : vector<8x128xf32>
    %24 = tpu.matmul %22, %23, %cst_16 {dimension_numbers = #tpu.dot_dimension_numbers<[1], [0], [0], [1], [0, 0, 1, 1], [], []>} : vector<8x128xbf16>, vector<128x128xbf16>, vector<8x128xf32> -> vector<8x128xf32>
    %c0_17 = arith.constant 0 : index
    %c0_18 = arith.constant 0 : index
    %25 = vector.load %arg7[%c0_17, %c0_18] : memref<1x128xf32, #tpu.memory_space<vmem>>, vector<1x128xf32>
    %26 = vector.broadcast %25 : vector<1x128xf32> to vector<8x128xf32>
    %27 = arith.addf %24, %26 : vector<8x128xf32>
    %c0_19 = arith.constant 0 : index
    %c0_20 = arith.constant 0 : index
    %28 = vector.load %arg8[%c0_19, %c0_20] : memref<8x128xf32, #tpu.memory_space<vmem>>, vector<8x128xf32>
    tpu.vector_store %arg8[%c0_19, %c0_20], %27 {strides = array<i32>} : memref<8x128xf32, #tpu.memory_space<vmem>>, vector<8x128xf32>,
    return
  }
  func.func @transform_0(%arg0: i32) -> (i32, i32) {
    %c0_i32 = arith.constant 0 : i32
    %c0_i32_0 = arith.constant 0 : i32
    return %arg0, %c0_i32 : i32, i32
  }
  func.func @transform_1(%arg0: i32) -> (i32, i32) {
    %c0_i32 = arith.constant 0 : i32
    %c0_i32_0 = arith.constant 0 : i32
    %c0_i32_1 = arith.constant 0 : i32
    return %c0_i32, %c0_i32_0 : i32, i32
  }
  func.func @transform_2(%arg0: i32) -> (i32, i32) {
    %c0_i32 = arith.constant 0 : i32
    %c0_i32_0 = arith.constant 0 : i32
    %c0_i32_1 = arith.constant 0 : i32
    return %c0_i32, %c0_i32_0 : i32, i32
  }
  func.func @transform_3(%arg0: i32) -> (i32, i32) {
    %c0_i32 = arith.constant 0 : i32
    %c0_i32_0 = arith.constant 0 : i32
    %c0_i32_1 = arith.constant 0 : i32
    return %c0_i32, %c0_i32_0 : i32, i32
  }
  func.func @transform_4(%arg0: i32) -> (i32, i32) {
    %c0_i32 = arith.constant 0 : i32
    %c0_i32_0 = arith.constant 0 : i32
    %c0_i32_1 = arith.constant 0 : i32
    return %c0_i32, %c0_i32_0 : i32, i32
  }
  func.func @transform_5(%arg0: i32) -> (i32, i32) {
    %c0_i32 = arith.constant 0 : i32
    %c0_i32_0 = arith.constant 0 : i32
    %c0_i32_1 = arith.constant 0 : i32
    return %c0_i32, %c0_i32_0 : i32, i32
  }
  func.func @transform_6(%arg0: i32) -> (i32, i32) {
    %c0_i32 = arith.constant 0 : i32
    %c0_i32_0 = arith.constant 0 : i32
    %c0_i32_1 = arith.constant 0 : i32
    return %c0_i32, %c0_i32_0 : i32, i32
  }
  func.func @transform_7(%arg0: i32) -> (i32, i32) {
    %c0_i32 = arith.constant 0 : i32
    %c0_i32_0 = arith.constant 0 : i32
    return %arg0, %c0_i32 : i32, i32
  }
}

</mosaic_0001>

<llo_original>
// kernel: _forward_impl.1
$region0: #{_forward_impl.1}
  #allocation0 [shape = 'u32[]', space=smem, size = 0x4, offset = 0x4, fixed_abs, tag = 'smem constant byte address 0x4 - core index']
  #allocation1 [shape = 'u32[144,128]{1,0:T(1,128)}', space=vmem, size = 0x12000, scoped, tag = 'internal scratch']
  %s0 = inlined_call_operand.vmem [shape: bf16[8,128], index: 0, kind: input, shape index: {}]
  %s1 = inlined_call_operand.hbm [shape: bf16[128,128], index: 1, kind: input, shape index: {}]
  %s2 = inlined_call_operand.vmem [shape: f32[1,128], index: 2, kind: input, shape index: {}]
  %s3 = inlined_call_operand.hbm [shape: bf16[128,128], index: 3, kind: input, shape index: {}]
  %s4 = inlined_call_operand.vmem [shape: f32[1,128], index: 4, kind: input, shape index: {}]
  %s5 = inlined_call_operand.hbm [shape: bf16[128,128], index: 5, kind: input, shape index: {}]
  %s6 = inlined_call_operand.vmem [shape: f32[1,128], index: 6, kind: input, shape index: {}]
  %s7 = inlined_call_operand.hbm [shape: f32[8,128], index: 7, kind: output, shape index: {}]
  %s8 = sld [smem:[#allocation0]]
  $region50: #{_forward_impl.1} parent=0
    _
  %s10 = ssub.s32 1, %s8
  %s11 = scalar_select 0, %s10, %s8
  $region1: #{_forward_impl.1} parent=0
    #allocation2 [shape = 'u8[32768]{0}', space=vmem, size = 0x8000, scoped, tag = 'input window, operand 1, single buffered']
    #allocation3 [shape = 's32[1]{0}', space=sflag, size = 0x4, scoped, tag = 'scoped memory for _forward_impl.1']
    #allocation4 [shape = 's32[1]{0}', space=sflag, size = 0x4, scoped, tag = 'scoped memory for _forward_impl.1']
    #allocation5 [shape = 'u8[32768]{0}', space=vmem, size = 0x8000, scoped, tag = 'input window, operand 3, single buffered']
    #allocation6 [shape = 's32[1]{0}', space=sflag, size = 0x4, scoped, tag = 'scoped memory for _forward_impl.1']
    #allocation7 [shape = 'u8[32768]{0}', space=vmem, size = 0x8000, scoped, tag = 'input window, operand 5, single buffered']
    #allocation8 [shape = 'u8[4096]{0}', space=vmem, size = 0x1000, scoped, tag = 'output window, operand 0, single buffered']
    %12 = vsyncpa [#allocation3], 0
    %13 = vsyncpa [#allocation6], 0
    %14 = vsyncpa [#allocation4], 0
    // Predicated region
    $region2: #{_forward_impl.1} parent=1 // pred_check
      _
    $region3: #{_forward_impl.1} parent=1 // pred_check_branch
      %16 = sbr.rel (0) target = $region5
    $region4: #{_forward_impl.1} parent=1 // pred_region
      _
    $region5: #{_forward_impl.1} parent=1 // pred_fallthru
      _
    // Predicated region
    $region6: #{_forward_impl.1} parent=1 // pred_check
      _
    $region7: #{_forward_impl.1} parent=1 // pred_check_branch
      %18 = sbr.rel (0) target = $region9
    $region8: #{_forward_impl.1} parent=1 // pred_region
      %s20 = ssub.s32 1024, 1024
      %21 = vsyncadd [#allocation3], %s20
      %s22 = sshll.u32 [#allocation2], 4
      %s23 = int_to_ptr.vmem [resolvable:$true] %s22
      %28 = dma.hbm_to_vmem [thread:$0]  %s1, 1024, %s23, [#allocation3], 64, 64, 4
    $region9: #{_forward_impl.1} parent=1 // pred_fallthru
      _
    // Predicated region
    $region10: #{_forward_impl.1} parent=1 // pred_check
      _
    $region11: #{_forward_impl.1} parent=1 // pred_check_branch
      %30 = sbr.rel (0) target = $region13
    $region12: #{_forward_impl.1} parent=1 // pred_region
      _
    $region13: #{_forward_impl.1} parent=1 // pred_fallthru
      _
    // Predicated region
    $region14: #{_forward_impl.1} parent=1 // pred_check
      _
    $region15: #{_forward_impl.1} parent=1 // pred_check_branch
      %32 = sbr.rel (0) target = $region17
    $region16: #{_forward_impl.1} parent=1 // pred_region
      %s34 = ssub.s32 1024, 1024
      %35 = vsyncadd [#allocation6], %s34
      %s36 = sshll.u32 [#allocation5], 4
      %s37 = int_to_ptr.vmem [resolvable:$true] %s36
      %42 = dma.hbm_to_vmem [thread:$0]  %s3, 1024, %s37, [#allocation6], 64, 64, 4
    $region17: #{_forward_impl.1} parent=1 // pred_fallthru
      _
    // Predicated region
    $region18: #{_forward_impl.1} parent=1 // pred_check
      _
    $region19: #{_forward_impl.1} parent=1 // pred_check_branch
      %44 = sbr.rel (0) target = $region21
    $region20: #{_forward_impl.1} parent=1 // pred_region
      _
    $region21: #{_forward_impl.1} parent=1 // pred_fallthru
      _
    // Predicated region
    $region22: #{_forward_impl.1} parent=1 // pred_check
      _
    $region23: #{_forward_impl.1} parent=1 // pred_check_branch
      %46 = sbr.rel (0) target = $region25
    $region24: #{_forward_impl.1} parent=1 // pred_region
      %s48 = ssub.s32 1024, 1024
      %49 = vsyncadd [#allocation6], %s48
      %s50 = sshll.u32 [#allocation7], 4
      %s51 = int_to_ptr.vmem [resolvable:$true] %s50
      %56 = dma.hbm_to_vmem [thread:$0]  %s5, 1024, %s51, [#allocation6], 64, 64, 4
    $region25: #{_forward_impl.1} parent=1 // pred_fallthru
      _
    // Predicated region
    $region26: #{_forward_impl.1} parent=1 // pred_check
      _
    $region27: #{_forward_impl.1} parent=1 // pred_check_branch
      %58 = sbr.rel (0) target = $region29
    $region28: #{_forward_impl.1} parent=1 // pred_region
      _
    $region29: #{_forward_impl.1} parent=1 // pred_fallthru
      _
    // Predicated region
    $region30: #{_forward_impl.1} parent=1 // pred_check
      _
    $region31: #{_forward_impl.1} parent=1 // pred_check_branch
      %60 = sbr.rel (0) target = $region33
    $region32: #{_forward_impl.1} parent=1 // pred_region
      %61 = dma.done [#allocation3], 1024
    $region33: #{_forward_impl.1} parent=1 // pred_fallthru
      _
    // Predicated region
    $region34: #{_forward_impl.1} parent=1 // pred_check
      _
    $region35: #{_forward_impl.1} parent=1 // pred_check_branch
      %63 = sbr.rel (0) target = $region37
    $region36: #{_forward_impl.1} parent=1 // pred_region
      %64 = dma.done [#allocation6], 1024
    $region37: #{_forward_impl.1} parent=1 // pred_fallthru
      _
    // Predicated region
    $region38: #{_forward_impl.1} parent=1 // pred_check
      _
    $region39: #{_forward_impl.1} parent=1 // pred_check_branch
      %66 = sbr.rel (0) target = $region41
    $region40: #{_forward_impl.1} parent=1 // pred_region
      %67 = dma.done [#allocation6], 1024
    $region41: #{_forward_impl.1} parent=1 // pred_fallthru
      _
    %v69 = vld [vmem:[%s0] sm:$0xf]
    %v70 = vld [vmem:[#allocation2] sm:$0xf]
    %v71 = vld [vmem:[#allocation2 + $0x4] sm:$0xf]
    %v72 = vld [vmem:[#allocation2 + $0x8] sm:$0xf]
    %v73 = vld [vmem:[#allocation2 + $0xc] sm:$0xf]
    %v74 = vld [vmem:[#allocation2 + $0x10] sm:$0xf]
    %v75 = vld [vmem:[#allocation2 + $0x14] sm:$0xf]
    %v76 = vld [vmem:[#allocation2 + $0x18] sm:$0xf]
    %v77 = vld [vmem:[#allocation2 + $0x1c] sm:$0xf]
    %v78 = vld [vmem:[#allocation2 + $0x20] sm:$0xf]
    %v79 = vld [vmem:[#allocation2 + $0x24] sm:$0xf]
    %v80 = vld [vmem:[#allocation2 + $0x28] sm:$0xf]
    %v81 = vld [vmem:[#allocation2 + $0x2c] sm:$0xf]
    %v82 = vld [vmem:[#allocation2 + $0x30] sm:$0xf]
    %v83 = vld [vmem:[#allocation2 + $0x34] sm:$0xf]
    %v84 = vld [vmem:[#allocation2 + $0x38] sm:$0xf]
    %v85 = vld [vmem:[#allocation2 + $0x3c] sm:$0xf]
    %v86 = vld [vmem:[%s2] sm:$0x1]
    %v88 = vlaneseq
    %v89 = vshrl.u32 %v88, 7
    %v90 = vsub.s32 0, %v89
    %v91 = vrot.slane %v86, %v90
    %v109 = vunpack.c.l.b16 %v70
    %v110 = vunpack.c.l.b16 %v71
    %v111 = vunpack.c.l.b16 %v72
    %v112 = vunpack.c.l.b16 %v73
    %v113 = vunpack.c.l.b16 %v74
    %v114 = vunpack.c.l.b16 %v75
    %v115 = vunpack.c.l.b16 %v76
    %v116 = vunpack.c.l.b16 %v77
    %v117 = vunpack.c.l.b16 %v78
    %v118 = vunpack.c.l.b16 %v79
    %v119 = vunpack.c.l.b16 %v80
    %v120 = vunpack.c.l.b16 %v81
    %v121 = vunpack.c.l.b16 %v82
    %v122 = vunpack.c.l.b16 %v83
    %v123 = vunpack.c.l.b16 %v84
    %v124 = vunpack.c.l.b16 %v85
    %v125 = vpack.c.b16 %v110, %v109
    %v126 = vpack.c.b16 %v112, %v111
    %v127 = vpack.c.b16 %v114, %v113
    %v128 = vpack.c.b16 %v116, %v115
    %v129 = vpack.c.b16 %v118, %v117
    %v130 = vpack.c.b16 %v120, %v119
    %v131 = vpack.c.b16 %v122, %v121
    %v132 = vpack.c.b16 %v124, %v123
    %141 = vmatprep.subr.bf16.mxu0 0
    %142 = vmatpush1.bf16.msra.mxu0 %v125
    %143 = vmatprep.subr.bf16.mxu0 0
    %144 = vmatpush1.bf16.msra.mxu0 %v126
    %145 = vmatprep.subr.bf16.mxu0 0
    %146 = vmatpush1.bf16.msra.mxu0 %v127
    %147 = vmatprep.subr.bf16.mxu0 0
    %148 = vmatpush1.bf16.msra.mxu0 %v128
    %149 = vmatprep.subr.bf16.mxu0 0
    %150 = vmatpush1.bf16.msra.mxu0 %v129
    %151 = vmatprep.subr.bf16.mxu0 0
    %152 = vmatpush1.bf16.msra.mxu0 %v130
    %153 = vmatprep.subr.bf16.mxu0 0
    %154 = vmatpush1.bf16.msra.mxu0 %v131
    %155 = vmatprep.subr.bf16.mxu0 0
    %156 = vmatpush1.bf16.msra.mxu0 %v132
    %157 = vmatprep.subr.bf16.mxu0 0
    %158 = vmatpush1.bf16.msra.mxu0 0
    %159 = vmatprep.subr.bf16.mxu0 0
    %160 = vmatpush1.bf16.msra.mxu0 0
    %161 = vmatprep.subr.bf16.mxu0 0
    %162 = vmatpush1.bf16.msra.mxu0 0
    %163 = vmatprep.subr.bf16.mxu0 0
    %164 = vmatpush1.bf16.msra.mxu0 0
    %165 = vmatprep.subr.bf16.mxu0 0
    %166 = vmatpush1.bf16.msra.mxu0 0
    %167 = vmatprep.subr.bf16.mxu0 0
    %168 = vmatpush1.bf16.msra.mxu0 0
    %169 = vmatprep.subr.bf16.mxu0 0
    %170 = vmatpush1.bf16.msra.mxu0 0
    %171 = vmatprep.subr.bf16.mxu0 0
    %172 = vmatpush1.bf16.msra.mxu0 0
    %173 = vmatprep.mubr.bf16.mxu0 0
    %174 = vmatmul.mubr.bf16.gmra.mrb[0].mxu0 %v69
    %v175 = vpop.f32.mrb[0].mxu0
    %v176 = vadd.f32 %v91, %v175
    %v177 = vpop.f32.mrb[0].mxu0
    %v178 = vpop.f32.mrb[0].mxu0
    %v179 = vpop.f32.mrb[0].mxu0
    %180 = vdwg.mxu0
    %vm181 = vcmp.gt.f32.partialorder %v176, 0.0
    %v182 = vmul.f32 %v176, 0.01
    %v183 = vsel %vm181, %v176, %v182
    %v184 = vpack.c.bf16 %v183, %v183
    %v185 = vld [vmem:[#allocation5] sm:$0xf]
    %v186 = vld [vmem:[#allocation5 + $0x4] sm:$0xf]
    %v187 = vld [vmem:[#allocation5 + $0x8] sm:$0xf]
    %v188 = vld [vmem:[#allocation5 + $0xc] sm:$0xf]
    %v189 = vld [vmem:[#allocation5 + $0x10] sm:$0xf]
    %v190 = vld [vmem:[#allocation5 + $0x14] sm:$0xf]
    %v191 = vld [vmem:[#allocation5 + $0x18] sm:$0xf]
    %v192 = vld [vmem:[#allocation5 + $0x1c] sm:$0xf]
    %v193 = vld [vmem:[#allocation5 + $0x20] sm:$0xf]
    %v194 = vld [vmem:[#allocation5 + $0x24] sm:$0xf]
    %v195 = vld [vmem:[#allocation5 + $0x28] sm:$0xf]
    %v196 = vld [vmem:[#allocation5 + $0x2c] sm:$0xf]
    %v197 = vld [vmem:[#allocation5 + $0x30] sm:$0xf]
    %v198 = vld [vmem:[#allocation5 + $0x34] sm:$0xf]
    %v199 = vld [vmem:[#allocation5 + $0x38] sm:$0xf]
    %v200 = vld [vmem:[#allocation5 + $0x3c] sm:$0xf]
    %v201 = vld [vmem:[%s4] sm:$0x1]
    %v203 = vlaneseq
    %v204 = vshrl.u32 %v203, 7
    %v205 = vsub.s32 0, %v204
    %v206 = vrot.slane %v201, %v205
    %v224 = vunpack.c.l.b16 %v185
    %v225 = vunpack.c.l.b16 %v186
    %v226 = vunpack.c.l.b16 %v187
    %v227 = vunpack.c.l.b16 %v188
    %v228 = vunpack.c.l.b16 %v189
    %v229 = vunpack.c.l.b16 %v190
    %v230 = vunpack.c.l.b16 %v191
    %v231 = vunpack.c.l.b16 %v192
    %v232 = vunpack.c.l.b16 %v193
    %v233 = vunpack.c.l.b16 %v194
    %v234 = vunpack.c.l.b16 %v195
    %v235 = vunpack.c.l.b16 %v196
    %v236 = vunpack.c.l.b16 %v197
    %v237 = vunpack.c.l.b16 %v198
    %v238 = vunpack.c.l.b16 %v199
    %v239 = vunpack.c.l.b16 %v200
    %v240 = vpack.c.b16 %v225, %v224
    %v241 = vpack.c.b16 %v227, %v226
    %v242 = vpack.c.b16 %v229, %v228
    %v243 = vpack.c.b16 %v231, %v230
    %v244 = vpack.c.b16 %v233, %v232
    %v245 = vpack.c.b16 %v235, %v234
    %v246 = vpack.c.b16 %v237, %v236
    %v247 = vpack.c.b16 %v239, %v238
    %256 = vmatprep.subr.bf16.mxu0 0
    %257 = vmatpush1.bf16.msra.mxu0 %v240
    %258 = vmatprep.subr.bf16.mxu0 0
    %259 = vmatpush1.bf16.msra.mxu0 %v241
    %260 = vmatprep.subr.bf16.mxu0 0
    %261 = vmatpush1.bf16.msra.mxu0 %v242
    %262 = vmatprep.subr.bf16.mxu0 0
    %263 = vmatpush1.bf16.msra.mxu0 %v243
    %264 = vmatprep.subr.bf16.mxu0 0
    %265 = vmatpush1.bf16.msra.mxu0 %v244
    %266 = vmatprep.subr.bf16.mxu0 0
    %267 = vmatpush1.bf16.msra.mxu0 %v245
    %268 = vmatprep.subr.bf16.mxu0 0
    %269 = vmatpush1.bf16.msra.mxu0 %v246
    %270 = vmatprep.subr.bf16.mxu0 0
    %271 = vmatpush1.bf16.msra.mxu0 %v247
    %272 = vmatprep.subr.bf16.mxu0 0
    %273 = vmatpush1.bf16.msra.mxu0 0
    %274 = vmatprep.subr.bf16.mxu0 0
    %275 = vmatpush1.bf16.msra.mxu0 0
    %276 = vmatprep.subr.bf16.mxu0 0
    %277 = vmatpush1.bf16.msra.mxu0 0
    %278 = vmatprep.subr.bf16.mxu0 0
    %279 = vmatpush1.bf16.msra.mxu0 0
    %280 = vmatprep.subr.bf16.mxu0 0
    %281 = vmatpush1.bf16.msra.mxu0 0
    %282 = vmatprep.subr.bf16.mxu0 0
    %283 = vmatpush1.bf16.msra.mxu0 0
    %284 = vmatprep.subr.bf16.mxu0 0
    %285 = vmatpush1.bf16.msra.mxu0 0
    %286 = vmatprep.subr.bf16.mxu0 0
    %287 = vmatpush1.bf16.msra.mxu0 0
    %288 = vmatprep.mubr.bf16.mxu0 0
    %289 = vmatmul.mubr.bf16.gmra.mrb[0].mxu0 %v184
    %v290 = vpop.f32.mrb[0].mxu0
    %v291 = vadd.f32 %v206, %v290
    %v292 = vpop.f32.mrb[0].mxu0
    %v293 = vpop.f32.mrb[0].mxu0
    %v294 = vpop.f32.mrb[0].mxu0
    %295 = vdwg.mxu0
    %vm296 = vcmp.gt.f32.partialorder %v291, 0.0
    %v297 = vmul.f32 %v291, 0.01
    %v298 = vsel %vm296, %v291, %v297
    %v299 = vpack.c.bf16 %v298, %v298
    %v300 = vld [vmem:[#allocation7] sm:$0xf]
    %v301 = vld [vmem:[#allocation7 + $0x4] sm:$0xf]
    %v302 = vld [vmem:[#allocation7 + $0x8] sm:$0xf]
    %v303 = vld [vmem:[#allocation7 + $0xc] sm:$0xf]
    %v304 = vld [vmem:[#allocation7 + $0x10] sm:$0xf]
    %v305 = vld [vmem:[#allocation7 + $0x14] sm:$0xf]
    %v306 = vld [vmem:[#allocation7 + $0x18] sm:$0xf]
    %v307 = vld [vmem:[#allocation7 + $0x1c] sm:$0xf]
    %v308 = vld [vmem:[#allocation7 + $0x20] sm:$0xf]
    %v309 = vld [vmem:[#allocation7 + $0x24] sm:$0xf]
    %v310 = vld [vmem:[#allocation7 + $0x28] sm:$0xf]
    %v311 = vld [vmem:[#allocation7 + $0x2c] sm:$0xf]
    %v312 = vld [vmem:[#allocation7 + $0x30] sm:$0xf]
    %v313 = vld [vmem:[#allocation7 + $0x34] sm:$0xf]
    %v314 = vld [vmem:[#allocation7 + $0x38] sm:$0xf]
    %v315 = vld [vmem:[#allocation7 + $0x3c] sm:$0xf]
    %v316 = vld [vmem:[%s6] sm:$0x1]
    %v318 = vlaneseq
    %v319 = vshrl.u32 %v318, 7
    %v320 = vsub.s32 0, %v319
    %v321 = vrot.slane %v316, %v320
    %v339 = vunpack.c.l.b16 %v300
    %v340 = vunpack.c.l.b16 %v301
    %v341 = vunpack.c.l.b16 %v302
    %v342 = vunpack.c.l.b16 %v303
    %v343 = vunpack.c.l.b16 %v304
    %v344 = vunpack.c.l.b16 %v305
    %v345 = vunpack.c.l.b16 %v306
    %v346 = vunpack.c.l.b16 %v307
    %v347 = vunpack.c.l.b16 %v308
    %v348 = vunpack.c.l.b16 %v309
    %v349 = vunpack.c.l.b16 %v310
    %v350 = vunpack.c.l.b16 %v311
    %v351 = vunpack.c.l.b16 %v312
    %v352 = vunpack.c.l.b16 %v313
    %v353 = vunpack.c.l.b16 %v314
    %v354 = vunpack.c.l.b16 %v315
    %v355 = vpack.c.b16 %v340, %v339
    %v356 = vpack.c.b16 %v342, %v341
    %v357 = vpack.c.b16 %v344, %v343
    %v358 = vpack.c.b16 %v346, %v345
    %v359 = vpack.c.b16 %v348, %v347
    %v360 = vpack.c.b16 %v350, %v349
    %v361 = vpack.c.b16 %v352, %v351
    %v362 = vpack.c.b16 %v354, %v353
    %371 = vmatprep.subr.bf16.mxu0 0
    %372 = vmatpush1.bf16.msra.mxu0 %v355
    %373 = vmatprep.subr.bf16.mxu0 0
    %374 = vmatpush1.bf16.msra.mxu0 %v356
    %375 = vmatprep.subr.bf16.mxu0 0
    %376 = vmatpush1.bf16.msra.mxu0 %v357
    %377 = vmatprep.subr.bf16.mxu0 0
    %378 = vmatpush1.bf16.msra.mxu0 %v358
    %379 = vmatprep.subr.bf16.mxu0 0
    %380 = vmatpush1.bf16.msra.mxu0 %v359
    %381 = vmatprep.subr.bf16.mxu0 0
    %382 = vmatpush1.bf16.msra.mxu0 %v360
    %383 = vmatprep.subr.bf16.mxu0 0
    %384 = vmatpush1.bf16.msra.mxu0 %v361
    %385 = vmatprep.subr.bf16.mxu0 0
    %386 = vmatpush1.bf16.msra.mxu0 %v362
    %387 = vmatprep.subr.bf16.mxu0 0
    %388 = vmatpush1.bf16.msra.mxu0 0
    %389 = vmatprep.subr.bf16.mxu0 0
    %390 = vmatpush1.bf16.msra.mxu0 0
    %391 = vmatprep.subr.bf16.mxu0 0
    %392 = vmatpush1.bf16.msra.mxu0 0
    %393 = vmatprep.subr.bf16.mxu0 0
    %394 = vmatpush1.bf16.msra.mxu0 0
    %395 = vmatprep.subr.bf16.mxu0 0
    %396 = vmatpush1.bf16.msra.mxu0 0
    %397 = vmatprep.subr.bf16.mxu0 0
    %398 = vmatpush1.bf16.msra.mxu0 0
    %399 = vmatprep.subr.bf16.mxu0 0
    %400 = vmatpush1.bf16.msra.mxu0 0
    %401 = vmatprep.subr.bf16.mxu0 0
    %402 = vmatpush1.bf16.msra.mxu0 0
    %403 = vmatprep.mubr.bf16.mxu0 0
    %404 = vmatmul.mubr.bf16.gmra.mrb[0].mxu0 %v299
    %v405 = vpop.f32.mrb[0].mxu0
    %v406 = vadd.f32 %v321, %v405
    %v407 = vpop.f32.mrb[0].mxu0
    %v408 = vpop.f32.mrb[0].mxu0
    %v409 = vpop.f32.mrb[0].mxu0
    %410 = vdwg.mxu0
    %411 = vst [vmem:[#allocation8] sm:$0xff] %v406
    // Predicated region
    $region42: #{_forward_impl.1} parent=1 // pred_check
      _
    $region43: #{_forward_impl.1} parent=1 // pred_check_branch
      %413 = sbr.rel (0) target = $region45
    $region44: #{_forward_impl.1} parent=1 // pred_region
      %s415 = ssub.s32 128, 128
      %416 = vsyncadd [#allocation4], %s415
      %s418 = sshll.u32 [#allocation8], 4
      %s419 = int_to_ptr.vmem [resolvable:$true] %s418
      %421 = dma.vmem_to_hbm [thread:$0]  %s419, 128, %s7, [#allocation4]
    $region45: #{_forward_impl.1} parent=1 // pred_fallthru
      _
    // Predicated region
    $region46: #{_forward_impl.1} parent=1 // pred_check
      _
    $region47: #{_forward_impl.1} parent=1 // pred_check_branch
      %423 = sbr.rel (0) target = $region49
    $region48: #{_forward_impl.1} parent=1 // pred_region
      %424 = dma.done [#allocation4], 128
    $region49: #{_forward_impl.1} parent=1 // pred_fallthru
      _
    %425 = vsyncpa [#allocation3], 1
    %426 = vsyncpa [#allocation6], 1
    %427 = vsyncpa [#allocation4], 1

</llo_original>
